<compile_context>
chip_gen: v7x
topology: tpu7x:2x2x1
jax: 0.10.0
libtpu: 0.0.40
codegen_flags: <defaults>
</compile_context>

<pallas_src>
import functools

import jax
import jax.numpy as jnp
from jax import lax
from jax.experimental import pallas as pl
from jax.experimental.pallas import tpu as pltpu

_LANES = 128


# --------------------------------------------------------------------------
# Kernel 1a: pooling when the whole spatial extent fits in one column block.
#   One grid step per row block: direct reduce, no scratch, no masking.
# --------------------------------------------------------------------------
def _pool_kernel_single(x_ref, mean_ref, max_ref, *, hw):
    x = x_ref[...].astype(jnp.float32)                      # (row_tile, HW)
    mean_ref[...] = jnp.sum(x, axis=-1, keepdims=True) * (1.0 / hw)
    max_ref[...] = jnp.max(x, axis=-1, keepdims=True)


# --------------------------------------------------------------------------
# Kernel 1b: pooling with the spatial axis tiled over grid axis 1 (reduction,
# 'arbitrary').  Lane-dense accumulation; epilogue-only cross-lane reduce.
# --------------------------------------------------------------------------
def _pool_kernel_multi(x_ref, mean_ref, max_ref, sum_acc, max_acc, *, hw, col_tile):
    j = pl.program_id(1)
    nj = pl.num_programs(1)
    n_chunks = col_tile // _LANES            # col_tile is a multiple of 128 here
    tail = hw % col_tile                     # static; 0 => no ragged tail

    @pl.when(j == 0)
    def _():
        sum_acc[...] = jnp.zeros(sum_acc.shape, sum_acc.dtype)
        max_acc[...] = jnp.full(max_acc.shape, -jnp.inf, max_acc.dtype)

    def accum_full_block():
        # Unmasked fast path: per-lane partials with plain VPU adds / maxes.
        c0 = x_ref[:, 0:_LANES].astype(jnp.float32)
        ps, pm = c0, c0
        for q in range(1, n_chunks):
            c = x_ref[:, q * _LANES:(q + 1) * _LANES].astype(jnp.float32)
            ps = ps + c
            pm = jnp.maximum(pm, c)
        sum_acc[...] = sum_acc[...] + ps
        max_acc[...] = jnp.maximum(max_acc[...], pm)

    def accum_tail_block():
        # Last column block only: statically specialize per 128-lane chunk.
        ps = jnp.zeros(sum_acc.shape, jnp.float32)
        pm = jnp.full(max_acc.shape, -jnp.inf, jnp.float32)
        for q in range(n_chunks):
            lo = q * _LANES
            if lo >= tail:
                continue                      # chunk entirely past end of HW: skip
            c = x_ref[:, lo:lo + _LANES].astype(jnp.float32)
            if lo + _LANES <= tail:           # fully valid chunk: no mask
                cs, cm = c, c
            else:                             # the single straddling chunk
                lane = lax.broadcasted_iota(jnp.int32, c.shape, 1)
                valid = lane < (tail - lo)
                cs = jnp.where(valid, c, 0.0)
                cm = jnp.where(valid, c, -jnp.inf)
            ps = ps + cs
            pm = jnp.maximum(pm, cm)
        sum_acc[...] = sum_acc[...] + ps
        max_acc[...] = jnp.maximum(max_acc[...], pm)

    if tail == 0:
        accum_full_block()                    # no masking anywhere (static)
    else:
        @pl.when(j < nj - 1)
        def _():
            accum_full_block()

        @pl.when(j == nj - 1)
        def _():
            accum_tail_block()

    @pl.when(j == nj - 1)
    def _():
        # Epilogue: single XLU cross-lane reduce + lane-sparse (row_tile, 1)
        # store per row block.  max_acc lanes are all finite because nj >= 2
        # and the j == 0 block is never masked.
        mean_ref[...] = jnp.sum(sum_acc[...], axis=-1, keepdims=True) * (1.0 / hw)
        max_ref[...] = jnp.max(max_acc[...], axis=-1, keepdims=True)


# --------------------------------------------------------------------------
# Kernel 2: shared-MLP excitation + sigmoid gate (tiny; single invocation).
#   avg, mx: (B, C) f32; w1: (Cr, C) and w2: (C, Cr) in PyTorch layout.
# --------------------------------------------------------------------------
def _attn_mlp_kernel(avg_ref, max_ref, w1_ref, w2_ref, o_ref):
    nt = (((1,), (1,)), ((), ()))             # contract last dims (no transpose op)
    w1 = w1_ref[...].astype(jnp.float32)      # (Cr, C)
    w2 = w2_ref[...].astype(jnp.float32)      # (C, Cr)
    h_a = lax.dot_general(avg_ref[...], w1, nt, preferred_element_type=jnp.float32)
    h_m = lax.dot_general(max_ref[...], w1, nt, preferred_element_type=jnp.float32)
    # fc2 is linear: fc2(relu(h_a)) + fc2(relu(h_m)) == fc2(relu(h_a) + relu(h_m))
    h = jnp.maximum(h_a, 0.0) + jnp.maximum(h_m, 0.0)        # (B, Cr)
    logits = lax.dot_general(h, w2, nt, preferred_element_type=jnp.float32)
    o_ref[...] = jax.nn.sigmoid(logits).astype(o_ref.dtype)


@functools.partial(jax.jit, static_argnames=("tm", "tn"))
def channel_attention_forward(x, fc1_w, fc2_w, *, tm=512, tn=2048):
    """x: (B, C, H, W); fc1_w: (C//16, C); fc2_w: (C, C//16) (1x1 conv weights squeezed)."""
    B, C, H, W = x.shape
    Cr = fc1_w.shape[0]
    M, HW = B * C, H * W

    # Free reshape: NCHW is contiguous over (H, W); no transpose / HBM round-trip.
    x2d = x.reshape(M, HW)

    # Row tile: multiple of 8, capped at tm, and split >= 2 ways so the
    # 'parallel' row axis can shard across both v7x TensorCores (harmless on
    # single-TC v5e/v6e).  Partial trailing row blocks read unspecified rows,
    # but those map to output rows >= M which are never written back.
    if M <= 8:
        row_tile = M
    else:
        row_tile = min(tm, 8 * pl.cdiv(pl.cdiv(M, 2), 8))
    n_row_blocks = pl.cdiv(M, row_tile)

    itemsize = jnp.dtype(x.dtype).itemsize
    pool_cost = pl.CostEstimate(
        flops=2 * M * HW,
        transcendentals=0,
        bytes_accessed=M * HW * itemsize + 2 * M * 4)

    if HW <= tn:
        # Whole spatial extent in one column block: one step per row block.
        pooled_avg, pooled_max = pl.pallas_call(
            functools.partial(_pool_kernel_single, hw=HW),
            out_shape=(jax.ShapeDtypeStruct((M, 1), jnp.float32),
                       jax.ShapeDtypeStruct((M, 1), jnp.float32)),
            grid_spec=pltpu.PrefetchScalarGridSpec(
                num_scalar_prefetch=0,
                grid=(n_row_blocks,),
                in_specs=[pl.BlockSpec((row_tile, HW), lambda i: (i, 0))],
                out_specs=[pl.BlockSpec((row_tile, 1), lambda i: (i, 0)),
                           pl.BlockSpec((row_tile, 1), lambda i: (i, 0))]),
            compiler_params=pltpu.CompilerParams(
                dimension_semantics=("parallel",)),
            cost_estimate=pool_cost,
        )(x2d)
    else:
        col_tile = tn                          # multiple of 128 (4 MiB f32 block max)
        n_col_blocks = pl.cdiv(HW, col_tile)
        pooled_avg, pooled_max = pl.pallas_call(
            functools.partial(_pool_kernel_multi, hw=HW, col_tile=col_tile),
            out_shape=(jax.ShapeDtypeStruct((M, 1), jnp.float32),
                       jax.ShapeDtypeStruct((M, 1), jnp.float32)),
            grid_spec=pltpu.PrefetchScalarGridSpec(
                num_scalar_prefetch=0,
                grid=(n_row_blocks, n_col_blocks),
                in_specs=[pl.BlockSpec((row_tile, col_tile), lambda i, j: (i, j))],
                out_specs=[pl.BlockSpec((row_tile, 1), lambda i, j: (i, 0)),
                           pl.BlockSpec((row_tile, 1), lambda i, j: (i, 0))],
                scratch_shapes=[pltpu.VMEM((row_tile, _LANES), jnp.float32),
                                pltpu.VMEM((row_tile, _LANES), jnp.float32)]),
            compiler_params=pltpu.CompilerParams(
                dimension_semantics=("parallel", "arbitrary")),
            cost_estimate=pool_cost,
        )(x2d)

    # (M, 1) -> (B, C): layout-preserving reshape of contiguous data.
    avg = pooled_avg.reshape(B, C)
    mx = pooled_max.reshape(B, C)

    att = pl.pallas_call(
        _attn_mlp_kernel,
        out_shape=jax.ShapeDtypeStruct((B, C), x.dtype),
        in_specs=[pl.BlockSpec(memory_space=pltpu.MemorySpace.VMEM)] * 4,
        out_specs=pl.BlockSpec(memory_space=pltpu.MemorySpace.VMEM),
        cost_estimate=pl.CostEstimate(
            flops=6 * B * C * Cr,
            transcendentals=B * C,
            bytes_accessed=4 * (2 * B * C + 2 * C * Cr + B * C)),
    )(avg, mx, fc1_w, fc2_w)

    return att.reshape(B, C, 1, 1)


def _reference(x, fc1_w, fc2_w):
    avg = jnp.mean(x, axis=(2, 3))            # (B, C)
    mx = jnp.max(x, axis=(2, 3))              # (B, C)

    def mlp(v):
        return jnp.maximum(v @ fc1_w.T, 0.0) @ fc2_w.T

    out = jax.nn.sigmoid(mlp(avg) + mlp(mx))
    return out.reshape(out.shape[0], out.shape[1], 1, 1)


if __name__ == "__main__":
    master = jax.random.PRNGKey(0)

    def check(kseed, B, C, H, W):
        kx, k1, k2 = jax.random.split(jax.random.fold_in(master, kseed), 3)
        Cr = C // 16                          # module hardcodes in_planes // 16
        x = jax.random.normal(kx, (B, C, H, W), dtype=jnp.float32)
        fc1_w = jax.random.normal(k1, (Cr, C), dtype=jnp.float32) * 0.1
        fc2_w = jax.random.normal(k2, (C, Cr), dtype=jnp.float32) * 0.1

        out = channel_attention_forward(x, fc1_w, fc2_w)
        jax.block_until_ready(out)

        ref = _reference(x, fc1_w, fc2_w)
        assert out.shape == (B, C, 1, 1), out.shape
        assert jnp.allclose(out, ref, atol=2e-5, rtol=2e-5), float(
            jnp.max(jnp.abs(out - ref)))

    # Single-column-block path (HW <= tn), megacore row split.
    check(0, B=2, C=64, H=16, W=16)
    # Multi-column-block path with a non-128-aligned ragged spatial tail.
    check(1, B=2, C=32, H=60, W=60)

    print("KERNEL_OK")
</pallas_src>

<mosaic_0001>
module attributes {stable_mosaic.version = 11 : i64} {
  func.func @_pool_kernel_single(%arg0: i32, %arg1: memref<64x256xf32, #tpu.memory_space<vmem>>, %arg2: memref<64x1xf32, #tpu.memory_space<vmem>>, %arg3: memref<64x1xf32, #tpu.memory_space<vmem>>) attributes {dimension_semantics = [#tpu.dimension_semantics<parallel>], iteration_bounds = array<i64: 2>, scalar_prefetch = 0 : i64, scratch_operands = 0 : i64, tpu.core_type = #tpu.core_type<tc>, window_params = [{transform_indices = @transform_0, window_bounds = array<i64: 64, 256>}, {transform_indices = @transform_1, window_bounds = array<i64: 64, 1>}, {transform_indices = @transform_2, window_bounds = array<i64: 64, 1>}]} {
    %c0 = arith.constant 0 : index
    %c0_0 = arith.constant 0 : index
    %0 = vector.load %arg1[%c0, %c0_0] : memref<64x256xf32, #tpu.memory_space<vmem>>, vector<64x256xf32>
    %cst = arith.constant dense<0.000000e+00> : vector<64xf32>
    %1 = vector.multi_reduction <add>, %0, %cst [1] : vector<64x256xf32> to vector<64xf32>
    %2 = vector.shape_cast %1 : vector<64xf32> to vector<64x1xf32>
    %cst_1 = arith.constant 3.906250e-03 : f32
    %3 = vector.broadcast %cst_1 : f32 to vector<64x1xf32>
    %4 = arith.mulf %2, %3 : vector<64x1xf32>
    %c0_2 = arith.constant 0 : index
    %c0_3 = arith.constant 0 : index
    %5 = vector.load %arg2[%c0_2, %c0_3] : memref<64x1xf32, #tpu.memory_space<vmem>>, vector<64x1xf32>
    tpu.vector_store %arg2[%c0_2, %c0_3], %4 {strides = array<i32>} : memref<64x1xf32, #tpu.memory_space<vmem>>, vector<64x1xf32>,
    %cst_4 = arith.constant dense<0xFF800000> : vector<64xf32>
    %6 = vector.multi_reduction <maximumf>, %0, %cst_4 [1] : vector<64x256xf32> to vector<64xf32>
    %7 = vector.shape_cast %6 : vector<64xf32> to vector<64x1xf32>
    %c0_5 = arith.constant 0 : index
    %c0_6 = arith.constant 0 : index
    %8 = vector.load %arg3[%c0_5, %c0_6] : memref<64x1xf32, #tpu.memory_space<vmem>>, vector<64x1xf32>
    tpu.vector_store %arg3[%c0_5, %c0_6], %7 {strides = array<i32>} : memref<64x1xf32, #tpu.memory_space<vmem>>, vector<64x1xf32>,
    return
  }
  func.func @transform_0(%arg0: i32) -> (i32, i32) {
    %c0_i32 = arith.constant 0 : i32
    %c0_i32_0 = arith.constant 0 : i32
    return %arg0, %c0_i32 : i32, i32
  }
  func.func @transform_1(%arg0: i32) -> (i32, i32) {
    %c0_i32 = arith.constant 0 : i32
    %c0_i32_0 = arith.constant 0 : i32
    return %arg0, %c0_i32 : i32, i32
  }
  func.func @transform_2(%arg0: i32) -> (i32, i32) {
    %c0_i32 = arith.constant 0 : i32
    %c0_i32_0 = arith.constant 0 : i32
    return %arg0, %c0_i32 : i32, i32
  }
}

module attributes {stable_mosaic.version = 11 : i64} {
  func.func @_attn_mlp_kernel(%arg0: memref<2x64xf32, #tpu.memory_space<vmem>>, %arg1: memref<2x64xf32, #tpu.memory_space<vmem>>, %arg2: memref<4x64xf32, #tpu.memory_space<vmem>>, %arg3: memref<64x4xf32, #tpu.memory_space<vmem>>, %arg4: memref<2x64xf32, #tpu.memory_space<vmem>>) attributes {dimension_semantics = [], scalar_prefetch = 0 : i64, scratch_operands = 0 : i64, tpu.core_type = #tpu.core_type<tc>} {
    %c0 = arith.constant 0 : index
    %c0_0 = arith.constant 0 : index
    %0 = vector.load %arg2[%c0, %c0_0] : memref<4x64xf32, #tpu.memory_space<vmem>>, vector<4x64xf32>
    %c0_1 = arith.constant 0 : index
    %c0_2 = arith.constant 0 : index
    %1 = vector.load %arg3[%c0_1, %c0_2] : memref<64x4xf32, #tpu.memory_space<vmem>>, vector<64x4xf32>
    %c0_3 = arith.constant 0 : index
    %c0_4 = arith.constant 0 : index
    %2 = vector.load %arg0[%c0_3, %c0_4] : memref<2x64xf32, #tpu.memory_space<vmem>>, vector<2x64xf32>
    %cst = arith.constant dense<0.000000e+00> : vector<2x4xf32>
    %3 = tpu.matmul %2, %0, %cst {dimension_numbers = #tpu.dot_dimension_numbers<[1], [1], [0], [0], [0, 0, 1, 0], [], []>} : vector<2x64xf32>, vector<4x64xf32>, vector<2x4xf32> -> vector<2x4xf32>
    %c0_5 = arith.constant 0 : index
    %c0_6 = arith.constant 0 : index
    %4 = vector.load %arg1[%c0_5, %c0_6] : memref<2x64xf32, #tpu.memory_space<vmem>>, vector<2x64xf32>
    %cst_7 = arith.constant dense<0.000000e+00> : vector<2x4xf32>
    %5 = tpu.matmul %4, %0, %cst_7 {dimension_numbers = #tpu.dot_dimension_numbers<[1], [1], [0], [0], [0, 0, 1, 0], [], []>} : vector<2x64xf32>, vector<4x64xf32>, vector<2x4xf32> -> vector<2x4xf32>
    %cst_8 = arith.constant 0.000000e+00 : f32
    %6 = vector.broadcast %cst_8 : f32 to vector<2x4xf32>
    %7 = arith.maximumf %3, %6 : vector<2x4xf32>
    %cst_9 = arith.constant 0.000000e+00 : f32
    %8 = vector.broadcast %cst_9 : f32 to vector<2x4xf32>
    %9 = arith.maximumf %5, %8 : vector<2x4xf32>
    %10 = arith.addf %7, %9 : vector<2x4xf32>
    %cst_10 = arith.constant dense<0.000000e+00> : vector<2x64xf32>
    %11 = tpu.matmul %10, %1, %cst_10 {dimension_numbers = #tpu.dot_dimension_numbers<[1], [1], [0], [0], [0, 0, 1, 0], [], []>} : vector<2x4xf32>, vector<64x4xf32>, vector<2x64xf32> -> vector<2x64xf32>
    %12 = arith.negf %11 : vector<2x64xf32>
    %13 = math.exp %12 : vector<2x64xf32>
    %cst_11 = arith.constant 1.000000e+00 : f32
    %14 = vector.broadcast %cst_11 : f32 to vector<2x64xf32>
    %15 = arith.addf %14, %13 : vector<2x64xf32>
    %16 = arith.divf %14, %15 : vector<2x64xf32>
    %c0_12 = arith.constant 0 : index
    %c0_13 = arith.constant 0 : index
    %17 = vector.load %arg4[%c0_12, %c0_13] : memref<2x64xf32, #tpu.memory_space<vmem>>, vector<2x64xf32>
    tpu.vector_store %arg4[%c0_12, %c0_13], %16 {strides = array<i32>} : memref<2x64xf32, #tpu.memory_space<vmem>>, vector<2x64xf32>,
    return
  }
}

</mosaic_0001>

<llo_original>
// kernel: channel_attention_forward.2
$region0: #{channel_attention_forward.2}
  #allocation0 [shape = 'u32[]', space=smem, size = 0x4, offset = 0x4, fixed_abs, tag = 'smem constant byte address 0x4 - core index']
  #allocation1 [shape = 'u32[144,128]{1,0:T(1,128)}', space=vmem, size = 0x12000, scoped, tag = 'internal scratch']
  %s0 = inlined_call_operand.vmem [shape: f32[128,256], index: 0, kind: input, shape index: {}]
  %s1 = inlined_call_operand.vmem [shape: f32[128,1], index: 1, kind: output, shape index: {0}]
  %s2 = inlined_call_operand.vmem [shape: f32[128,1], index: 2, kind: output, shape index: {1}]
  %3 = xla_tuple %s1, %s2
  %s4 = sld [smem:[#allocation0]]
  $region45: #{channel_attention_forward.2} parent=0
    _
  %s6 = ssub.s32 1, %s4
  %s7 = scalar_select 0, %s6, %s4
  loop: start=0, step=1, limit=4
  $region2: #{channel_attention_forward.2} parent=0 // loop_pre_header
    _
  $region3: #{channel_attention_forward.2} parent=0 // loop_header
    %s9 = sphi 0, %s13
    %p10 = scmp.ge.s32.totalorder %s9, 4
    %s19 = sphi 0, %s21
    %s22 = sphi 0, %s19
    %s23 = sphi 0, %s22
    %s39 = sphi 0, %s23
    %s45 = sphi 0, %s47
    %s48 = sphi 0, %s45
    %s49 = sphi 0, %s48
    %s65 = sphi 0, %s49
    %s71 = sphi 0, %s73
    %s74 = sphi 0, %s71
    %s75 = sphi 0, %s74
    %s91 = sphi 0, %s75
  $region4: #{channel_attention_forward.2} parent=0 // loop_header_branch
    %12 = sbr.rel (%p10) target = $region8
  $region5: #{channel_attention_forward.2} parent=0 // loop_body
    %s14 = ssub.s32 %s9, 1
    %s15 = ssub.s32 %s9, 2
    %s16 = sadd.s32 %s9, 1
    %s17 = ssub.s32 %s9, %s16
    %p18 = scmp.eq.s32.totalorder %s17, 0
    %s20 = sadd.s32 %s19, 1
    %s21 = scalar_select %p18, %s19, %s20
    %p24 = pneg %p18
    %p25 = scmp.eq.s32.totalorder %s9, 1
    %p26 = por %p24, %p25
    %p27 = scmp.ne.s32.totalorder %s19, %s22
    %p28 = scmp.eq.s32.totalorder %s9, 0
    %p29 = por %p27, %p28
    %p30 = scmp.ne.s32.totalorder %s19, %s22
    %p31 = scmp.eq.s32.totalorder %s14, 1
    %p32 = por %p30, %p31
    %p33 = scmp.ne.s32.totalorder %s22, %s23
    %p34 = scmp.eq.s32.totalorder %s14, 0
    %p35 = por %p33, %p34
    %p36 = scmp.ne.s32.totalorder %s22, %s23
    %p37 = scmp.eq.s32.totalorder %s15, 1
    %p38 = por %p36, %p37
    %p40 = scmp.ne.s32.totalorder %s23, %s39
    %p41 = scmp.eq.s32.totalorder %s15, 0
    %p42 = por %p40, %p41
    %s43 = ssub.s32 %s9, %s16
    %p44 = scmp.eq.s32.totalorder %s43, 0
    %s46 = sadd.s32 %s45, 1
    %s47 = scalar_select %p44, %s45, %s46
    %p50 = pneg %p44
    %p51 = scmp.eq.s32.totalorder %s9, 1
    %p52 = por %p50, %p51
    %p53 = scmp.ne.s32.totalorder %s45, %s48
    %p54 = scmp.eq.s32.totalorder %s9, 0
    %p55 = por %p53, %p54
    %p56 = scmp.ne.s32.totalorder %s45, %s48
    %p57 = scmp.eq.s32.totalorder %s14, 1
    %p58 = por %p56, %p57
    %p59 = scmp.ne.s32.totalorder %s48, %s49
    %p60 = scmp.eq.s32.totalorder %s14, 0
    %p61 = por %p59, %p60
    %p62 = scmp.ne.s32.totalorder %s48, %s49
    %p63 = scmp.eq.s32.totalorder %s15, 1
    %p64 = por %p62, %p63
    %p66 = scmp.ne.s32.totalorder %s49, %s65
    %p67 = scmp.eq.s32.totalorder %s15, 0
    %p68 = por %p66, %p67
    %s69 = ssub.s32 %s9, %s16
    %p70 = scmp.eq.s32.totalorder %s69, 0
    %s72 = sadd.s32 %s71, 1
    %s73 = scalar_select %p70, %s71, %s72
    %p76 = pneg %p70
    %p77 = scmp.eq.s32.totalorder %s9, 1
    %p78 = por %p76, %p77
    %p79 = scmp.ne.s32.totalorder %s71, %s74
    %p80 = scmp.eq.s32.totalorder %s9, 0
    %p81 = por %p79, %p80
    %p82 = scmp.ne.s32.totalorder %s71, %s74
    %p83 = scmp.eq.s32.totalorder %s14, 1
    %p84 = por %p82, %p83
    %p85 = scmp.ne.s32.totalorder %s74, %s75
    %p86 = scmp.eq.s32.totalorder %s14, 0
    %p87 = por %p85, %p86
    %p88 = scmp.ne.s32.totalorder %s74, %s75
    %p89 = scmp.eq.s32.totalorder %s15, 1
    %p90 = por %p88, %p89
    %p92 = scmp.ne.s32.totalorder %s75, %s91
    %p93 = scmp.eq.s32.totalorder %s15, 0
    %p94 = por %p92, %p93
    %p95 = scmp.le.s32.totalorder 1, %s9
    %p96 = scmp.lt.s32.totalorder %s9, 3
    %p97 = pnand %p95, %p96
    %p98 = pneg %p97
    // Predicated region
    $region9: #{channel_attention_forward.2} parent=5 // pred_check
      _
    $region10: #{channel_attention_forward.2} parent=5 // pred_check_branch
      %100 = sbr.rel (%p97) target = $region12
    $region11: #{channel_attention_forward.2} parent=5 // pred_region
      %s101 = ssub.s32 %s9, 1
    $region12: #{channel_attention_forward.2} parent=5 // pred_fallthru
      _
    %p102 = scmp.lt.s32.totalorder %s9, 2
    // Predicated region
    $region13: #{channel_attention_forward.2} parent=5 // pred_check
      %p103 = pneg %p102
    $region14: #{channel_attention_forward.2} parent=5 // pred_check_branch
      %105 = sbr.rel (%p103) target = $region16
    $region15: #{channel_attention_forward.2} parent=5 // pred_region
      // Predicated region
      $region17: #{channel_attention_forward.2} parent=15 // pred_check
        %p106 = pneg %p29
      $region18: #{channel_attention_forward.2} parent=15 // pred_check_branch
        %108 = sbr.rel (%p106) target = $region20
      $region19: #{channel_attention_forward.2} parent=15 // pred_region
        %s109 = smul.u32 8, %s9
        %p110 = scmp.lt.s32.totalorder %s109, 15
        %s111 = scalar_select %p110, %s109, 15
        %s112 = smul.addr %s111, 2
        %s113 = smul.addr %s112, 8
        %s114 = scalar_lea.vmem %s0, %s113
        %s115 = smul.u32 8, %s9
      $region20: #{channel_attention_forward.2} parent=15 // pred_fallthru
        _
    $region16: #{channel_attention_forward.2} parent=5 // pred_fallthru
      _
    %p116 = scmp.le.s32.totalorder 1, %s9
    %p117 = scmp.lt.s32.totalorder %s9, 3
    %p118 = pnand %p116, %p117
    %p119 = pneg %p118
    // Predicated region
    $region21: #{channel_attention_forward.2} parent=5 // pred_check
      _
    $region22: #{channel_attention_forward.2} parent=5 // pred_check_branch
      %121 = sbr.rel (%p118) target = $region24
    $region23: #{channel_attention_forward.2} parent=5 // pred_region
      %s122 = ssub.s32 %s9, 1
      %s123 = smul.u32 8, %s14
      %p124 = scmp.lt.s32.totalorder %s123, 15
      %s125 = scalar_select %p124, %s123, 15
      %s126 = smul.addr %s125, 2
      %s127 = smul.addr %s126, 8
      %s128 = scalar_lea.vmem %s0, %s127
      %p129 = pneg %p35
      %p130 = pneg %p32
      %p131 = pneg %p61
      %p132 = pneg %p58
      %s133 = smul.u32 8, %s14
      %p134 = scmp.lt.s32.totalorder %s133, 15
      %s135 = scalar_select %p134, %s133, 15
      %s136 = smul.addr %s135, 8
      %s137 = scalar_lea.vmem %s1, %s136
      %p138 = pneg %p87
      %p139 = pneg %p84
      %s140 = smul.u32 8, %s14
      %p141 = scmp.lt.s32.totalorder %s140, 15
      %s142 = scalar_select %p141, %s140, 15
      %s143 = smul.addr %s142, 8
      %s144 = scalar_lea.vmem %s2, %s143
      %s145 = smul.u32 8, %s14
      %p146 = scmp.lt.s32.totalorder %s145, 15
      %s147 = scalar_select %p146, %s145, 15
      %s148 = smul.addr %s147, 2
      %s149 = smul.addr %s148, 8
      %s150 = scalar_lea.vmem %s0, %s149
      %s151 = smul.u32 8, %s14
      %s152 = smul.u32 8, %s14
      %p153 = scmp.lt.s32.totalorder %s152, 15
      %s154 = scalar_select %p153, %s152, 15
      %s155 = smul.addr %s154, 8
      %s156 = scalar_lea.vmem %s1, %s155
      %s157 = smul.u32 8, %s14
      %s158 = smul.u32 8, %s14
      %p159 = scmp.lt.s32.totalorder %s158, 15
      %s160 = scalar_select %p159, %s158, 15
      %s161 = smul.addr %s160, 8
      %s162 = scalar_lea.vmem %s2, %s161
      %s163 = smul.u32 8, %s14
      %v164 = vld [vmem:[%s150] sm:$0xff]
      %v165 = vld [vmem:[%s150 + $0x8] sm:$0xff]
      %v166 = vld [vmem:[%s150 + $0x10] sm:$0xff]
      %v167 = vld [vmem:[%s150 + $0x18] sm:$0xff]
      %v168 = vld [vmem:[%s150 + $0x20] sm:$0xff]
      %v169 = vld [vmem:[%s150 + $0x28] sm:$0xff]
      %v170 = vld [vmem:[%s150 + $0x30] sm:$0xff]
      %v171 = vld [vmem:[%s150 + $0x38] sm:$0xff]
      %v172 = vld [vmem:[%s150 + $0x40] sm:$0xff]
      %v173 = vld [vmem:[%s150 + $0x48] sm:$0xff]
      %v174 = vld [vmem:[%s150 + $0x50] sm:$0xff]
      %v175 = vld [vmem:[%s150 + $0x58] sm:$0xff]
      %v176 = vld [vmem:[%s150 + $0x60] sm:$0xff]
      %v177 = vld [vmem:[%s150 + $0x68] sm:$0xff]
      %v178 = vld [vmem:[%s150 + $0x70] sm:$0xff]
      %v179 = vld [vmem:[%s150 + $0x78] sm:$0xff]
      %v180 = vadd.f32 %v164, %v165
      %181 = vadd.xlane.f32.xlu0 %v180
      %v182 = vpop.xlane.xlu0 %181
      %v183 = vadd.f32 %v166, %v167
      %184 = vadd.xlane.f32.xlu0 %v183
      %v185 = vpop.xlane.xlu0 %184
      %v186 = vadd.f32 %v168, %v169
      %187 = vadd.xlane.f32.xlu0 %v186
      %v188 = vpop.xlane.xlu0 %187
      %v189 = vadd.f32 %v170, %v171
      %190 = vadd.xlane.f32.xlu0 %v189
      %v191 = vpop.xlane.xlu0 %190
      %v192 = vadd.f32 %v172, %v173
      %193 = vadd.xlane.f32.xlu0 %v192
      %v194 = vpop.xlane.xlu0 %193
      %v195 = vadd.f32 %v174, %v175
      %196 = vadd.xlane.f32.xlu0 %v195
      %v197 = vpop.xlane.xlu0 %196
      %v198 = vadd.f32 %v176, %v177
      %199 = vadd.xlane.f32.xlu0 %v198
      %v200 = vpop.xlane.xlu0 %199
      %v201 = vadd.f32 %v178, %v179
      %202 = vadd.xlane.f32.xlu0 %v201
      %v203 = vpop.xlane.xlu0 %202
      %v204 = vmul.f32 %v182, 0.00390625
      %v205 = vmul.f32 %v185, 0.00390625
      %v206 = vmul.f32 %v188, 0.00390625
      %v207 = vmul.f32 %v191, 0.00390625
      %v208 = vmul.f32 %v194, 0.00390625
      %v209 = vmul.f32 %v197, 0.00390625
      %v210 = vmul.f32 %v200, 0.00390625
      %v211 = vmul.f32 %v203, 0.00390625
      %vm212 = vcmask 7168
      %213 = vst.msk [vmem:[%s156] sm:$0xff] %vm212, %v204
      %214 = vst.msk [vmem:[%s156 + $0x8] sm:$0xff] %vm212, %v205
      %215 = vst.msk [vmem:[%s156 + $0x10] sm:$0xff] %vm212, %v206
      %216 = vst.msk [vmem:[%s156 + $0x18] sm:$0xff] %vm212, %v207
      %217 = vst.msk [vmem:[%s156 + $0x20] sm:$0xff] %vm212, %v208
      %218 = vst.msk [vmem:[%s156 + $0x28] sm:$0xff] %vm212, %v209
      %219 = vst.msk [vmem:[%s156 + $0x30] sm:$0xff] %vm212, %v210
      %220 = vst.msk [vmem:[%s156 + $0x38] sm:$0xff] %vm212, %v211
      %v221 = vmax.f32 %v164, %v165
      %222 = vmax.xlane.f32.xlu0 %v221
      %v223 = vpop.xlane.xlu0 %222
      %v224 = vmax.f32 %v166, %v167
      %225 = vmax.xlane.f32.xlu0 %v224
      %v226 = vpop.xlane.xlu0 %225
      %v227 = vmax.f32 %v168, %v169
      %228 = vmax.xlane.f32.xlu0 %v227
      %v229 = vpop.xlane.xlu0 %228
      %v230 = vmax.f32 %v170, %v171
      %231 = vmax.xlane.f32.xlu0 %v230
      %v232 = vpop.xlane.xlu0 %231
      %v233 = vmax.f32 %v172, %v173
      %234 = vmax.xlane.f32.xlu0 %v233
      %v235 = vpop.xlane.xlu0 %234
      %v236 = vmax.f32 %v174, %v175
      %237 = vmax.xlane.f32.xlu0 %v236
      %v238 = vpop.xlane.xlu0 %237
      %v239 = vmax.f32 %v176, %v177
      %240 = vmax.xlane.f32.xlu0 %v239
      %v241 = vpop.xlane.xlu0 %240
      %v242 = vmax.f32 %v178, %v179
      %243 = vmax.xlane.f32.xlu0 %v242
      %v244 = vpop.xlane.xlu0 %243
      %245 = vst.msk [vmem:[%s162] sm:$0xff] %vm212, %v223
      %246 = vst.msk [vmem:[%s162 + $0x8] sm:$0xff] %vm212, %v226
      %247 = vst.msk [vmem:[%s162 + $0x10] sm:$0xff] %vm212, %v229
      %248 = vst.msk [vmem:[%s162 + $0x18] sm:$0xff] %vm212, %v232
      %249 = vst.msk [vmem:[%s162 + $0x20] sm:$0xff] %vm212, %v235
      %250 = vst.msk [vmem:[%s162 + $0x28] sm:$0xff] %vm212, %v238
      %251 = vst.msk [vmem:[%s162 + $0x30] sm:$0xff] %vm212, %v241
      %252 = vst.msk [vmem:[%s162 + $0x38] sm:$0xff] %vm212, %v244
      %s253 = smul.u32 8, %s14
      %p254 = scmp.lt.s32.totalorder %s253, 15
      %s255 = scalar_select %p254, %s253, 15
      %s256 = smul.addr %s255, 8
      %s257 = scalar_lea.vmem %s1, %s256
      %s258 = smul.u32 8, %s14
      %p259 = scmp.lt.s32.totalorder %s258, 15
      %s260 = scalar_select %p259, %s258, 15
      %s261 = smul.addr %s260, 8
      %s262 = scalar_lea.vmem %s2, %s261
      // Predicated region
      $region25: #{channel_attention_forward.2} parent=23 // pred_check
        %p263 = pneg %p58
      $region26: #{channel_attention_forward.2} parent=23 // pred_check_branch
        %265 = sbr.rel (%p263) target = $region28
      $region27: #{channel_attention_forward.2} parent=23 // pred_region
        %s266 = smul.u32 8, %s14
      $region28: #{channel_attention_forward.2} parent=23 // pred_fallthru
        _
      // Predicated region
      $region29: #{channel_attention_forward.2} parent=23 // pred_check
        %p267 = pneg %p84
      $region30: #{channel_attention_forward.2} parent=23 // pred_check_branch
        %269 = sbr.rel (%p267) target = $region32
      $region31: #{channel_attention_forward.2} parent=23 // pred_region
        %s270 = smul.u32 8, %s14
      $region32: #{channel_attention_forward.2} parent=23 // pred_fallthru
        _
    $region24: #{channel_attention_forward.2} parent=5 // pred_fallthru
      _
    %p271 = scmp.le.s32.totalorder 2, %s9
    // Predicated region
    $region33: #{channel_attention_forward.2} parent=5 // pred_check
      %p272 = pneg %p271
    $region34: #{channel_attention_forward.2} parent=5 // pred_check_branch
      %274 = sbr.rel (%p272) target = $region36
    $region35: #{channel_attention_forward.2} parent=5 // pred_region
      %s275 = ssub.s32 %s9, 2
      // Predicated region
      $region37: #{channel_attention_forward.2} parent=35 // pred_check
        %p276 = pneg %p64
      $region38: #{channel_attention_forward.2} parent=35 // pred_check_branch
        %278 = sbr.rel (%p276) target = $region40
      $region39: #{channel_attention_forward.2} parent=35 // pred_region
        %s279 = smul.u32 8, %s15
        %p280 = scmp.lt.s32.totalorder %s279, 15
        %s281 = scalar_select %p280, %s279, 15
        %s282 = smul.addr %s281, 8
        %s283 = scalar_lea.vmem %s1, %s282
      $region40: #{channel_attention_forward.2} parent=35 // pred_fallthru
        _
      // Predicated region
      $region41: #{channel_attention_forward.2} parent=35 // pred_check
        %p284 = pneg %p90
      $region42: #{channel_attention_forward.2} parent=35 // pred_check_branch
        %286 = sbr.rel (%p284) target = $region44
      $region43: #{channel_attention_forward.2} parent=35 // pred_region
        %s287 = smul.u32 8, %s15
        %p288 = scmp.lt.s32.totalorder %s287, 15
        %s289 = scalar_select %p288, %s287, 15
        %s290 = smul.addr %s289, 8
        %s291 = scalar_lea.vmem %s2, %s290
      $region44: #{channel_attention_forward.2} parent=35 // pred_fallthru
        _
    $region36: #{channel_attention_forward.2} parent=5 // pred_fallthru
      _
  $region6: #{channel_attention_forward.2} parent=0 // loop_footer
    %s13 = sadd.s32 1, %s9
  $region7: #{channel_attention_forward.2} parent=0 // loop_footer_branch
    %8 = sbr.rel target = $region3
  $region8: #{channel_attention_forward.2} parent=0 // loop_exit
    _

// kernel: channel_attention_forward.3
$region0: #{channel_attention_forward.3}
  #allocation0 [shape = 'u32[]', space=smem, size = 0x4, offset = 0x4, fixed_abs, tag = 'smem constant byte address 0x4 - core index']
  #allocation1 [shape = 'u32[144,128]{1,0:T(1,128)}', space=vmem, size = 0x12000, scoped, tag = 'internal scratch']
  %s0 = inlined_call_operand.vmem [shape: f32[2,64], index: 0, kind: input, shape index: {}]
  %s1 = inlined_call_operand.vmem [shape: f32[2,64], index: 1, kind: input, shape index: {}]
  %s2 = inlined_call_operand.vmem [shape: f32[4,64], index: 2, kind: input, shape index: {}]
  %s3 = inlined_call_operand.vmem [shape: f32[64,4], index: 3, kind: input, shape index: {}]
  %s4 = inlined_call_operand.hbm [shape: f32[2,64], index: 4, kind: output, shape index: {}]
  %s5 = sld [smem:[#allocation0]]
  $region26: #{channel_attention_forward.3} parent=0
    _
  %s7 = ssub.s32 1, %s5
  %s8 = scalar_select 0, %s7, %s5
  $region1: #{channel_attention_forward.3} parent=0
    #allocation2 [shape = 'u8[1024]{0}', space=vmem, size = 0x400, scoped, tag = 'output window, operand 0, single buffered']
    #allocation3 [shape = 's32[1]{0}', space=sflag, size = 0x4, scoped, tag = 'scoped memory for channel_attention_forward.3']
    %9 = vsyncpa [#allocation3], 0
    // Predicated region
    $region2: #{channel_attention_forward.3} parent=1 // pred_check
      _
    $region3: #{channel_attention_forward.3} parent=1 // pred_check_branch
      %11 = sbr.rel (0) target = $region5
    $region4: #{channel_attention_forward.3} parent=1 // pred_region
      _
    $region5: #{channel_attention_forward.3} parent=1 // pred_fallthru
      _
    // Predicated region
    $region6: #{channel_attention_forward.3} parent=1 // pred_check
      _
    $region7: #{channel_attention_forward.3} parent=1 // pred_check_branch
      %13 = sbr.rel (0) target = $region9
    $region8: #{channel_attention_forward.3} parent=1 // pred_region
      _
    $region9: #{channel_attention_forward.3} parent=1 // pred_fallthru
      _
    // Predicated region
    $region10: #{channel_attention_forward.3} parent=1 // pred_check
      _
    $region11: #{channel_attention_forward.3} parent=1 // pred_check_branch
      %15 = sbr.rel (0) target = $region13
    $region12: #{channel_attention_forward.3} parent=1 // pred_region
      _
    $region13: #{channel_attention_forward.3} parent=1 // pred_fallthru
      _
    // Predicated region
    $region14: #{channel_attention_forward.3} parent=1 // pred_check
      _
    $region15: #{channel_attention_forward.3} parent=1 // pred_check_branch
      %17 = sbr.rel (0) target = $region17
    $region16: #{channel_attention_forward.3} parent=1 // pred_region
      _
    $region17: #{channel_attention_forward.3} parent=1 // pred_fallthru
      _
    %v18 = vld [vmem:[%s2] sm:$0xf]
    %v19 = vld [vmem:[%s3] sm:$0xff]
    %v20 = vld [vmem:[%s3 + $0x8] sm:$0xff]
    %v21 = vld [vmem:[%s3 + $0x10] sm:$0xff]
    %v22 = vld [vmem:[%s3 + $0x18] sm:$0xff]
    %v23 = vld [vmem:[%s3 + $0x20] sm:$0xff]
    %v24 = vld [vmem:[%s3 + $0x28] sm:$0xff]
    %v25 = vld [vmem:[%s3 + $0x30] sm:$0xff]
    %v26 = vld [vmem:[%s3 + $0x38] sm:$0xff]
    %v27 = vld [vmem:[%s0] sm:$0x3]
    %vm28 = vcmask 523264
    %v30 = vsel %vm28, %v27, 0
    %v33 = vsel %vm28, %v18, 0
    %35 = vmatprep.subr.mxu0 0.0
    %36 = vmatpush1.xpose.msra.mxu0 %v33
    %37 = vmatprep.subr.mxu0 0.0
    %38 = vmatpush1.xpose.msra.mxu0 0.0
    %39 = vmatprep.subr.mxu0 0.0
    %40 = vmatpush1.xpose.msra.mxu0 0.0
    %41 = vmatprep.subr.mxu0 0.0
    %42 = vmatpush1.xpose.msra.mxu0 0.0
    %43 = vmatprep.subr.mxu0 0.0
    %44 = vmatpush1.xpose.msra.mxu0 0.0
    %45 = vmatprep.subr.mxu0 0.0
    %46 = vmatpush1.xpose.msra.mxu0 0.0
    %47 = vmatprep.subr.mxu0 0.0
    %48 = vmatpush1.xpose.msra.mxu0 0.0
    %49 = vmatprep.subr.mxu0 0.0
    %50 = vmatpush1.xpose.msra.mxu0 0.0
    %51 = vmatprep.subr.mxu0 0.0
    %52 = vmatpush1.xpose.msra.mxu0 0.0
    %53 = vmatprep.subr.mxu0 0.0
    %54 = vmatpush1.xpose.msra.mxu0 0.0
    %55 = vmatprep.subr.mxu0 0.0
    %56 = vmatpush1.xpose.msra.mxu0 0.0
    %57 = vmatprep.subr.mxu0 0.0
    %58 = vmatpush1.xpose.msra.mxu0 0.0
    %59 = vmatprep.subr.mxu0 0.0
    %60 = vmatpush1.xpose.msra.mxu0 0.0
    %61 = vmatprep.subr.mxu0 0.0
    %62 = vmatpush1.xpose.msra.mxu0 0.0
    %63 = vmatprep.subr.mxu0 0.0
    %64 = vmatpush1.xpose.msra.mxu0 0.0
    %65 = vmatprep.subr.mxu0 0.0
    %66 = vmatpush1.xpose.msra.mxu0 0.0
    %67 = vmatprep.subr.mxu0 0.0
    %68 = vmatpush1.xpose.msra.mxu0 0.0
    %69 = vmatprep.subr.mxu0 0.0
    %70 = vmatpush1.xpose.msra.mxu0 0.0
    %71 = vmatprep.subr.mxu0 0.0
    %72 = vmatpush1.xpose.msra.mxu0 0.0
    %73 = vmatprep.subr.mxu0 0.0
    %74 = vmatpush1.xpose.msra.mxu0 0.0
    %75 = vmatprep.subr.mxu0 0.0
    %76 = vmatpush1.xpose.msra.mxu0 0.0
    %77 = vmatprep.subr.mxu0 0.0
    %78 = vmatpush1.xpose.msra.mxu0 0.0
    %79 = vmatprep.subr.mxu0 0.0
    %80 = vmatpush1.xpose.msra.mxu0 0.0
    %81 = vmatprep.subr.mxu0 0.0
    %82 = vmatpush1.xpose.msra.mxu0 0.0
    %83 = vmatprep.subr.mxu0 0.0
    %84 = vmatpush1.xpose.msra.mxu0 0.0
    %85 = vmatprep.subr.mxu0 0.0
    %86 = vmatpush1.xpose.msra.mxu0 0.0
    %87 = vmatprep.subr.mxu0 0.0
    %88 = vmatpush1.xpose.msra.mxu0 0.0
    %89 = vmatprep.subr.mxu0 0.0
    %90 = vmatpush1.xpose.msra.mxu0 0.0
    %91 = vmatprep.subr.mxu0 0.0
    %92 = vmatpush1.xpose.msra.mxu0 0.0
    %93 = vmatprep.subr.mxu0 0.0
    %94 = vmatpush1.xpose.msra.mxu0 0.0
    %95 = vmatprep.subr.mxu0 0.0
    %96 = vmatpush1.xpose.msra.mxu0 0.0
    %97 = vmatprep.subr.mxu0 0.0
    %98 = vmatpush1.xpose.msra.mxu0 0.0
    %99 = vmatprep.mubr.f32.mxu0 0.0
    %100 = vmatmul.mubr.f32.gmra.mrb[0].mxu0 %v30
    %v101 = vpop.f32.mrb[0].mxu0
    %v102 = vadd.f32 0.0, %v101
    %v103 = vpop.f32.mrb[0].mxu0
    %104 = vdwg.mxu0
    %v105 = vld [vmem:[%s1] sm:$0x3]
    %v107 = vsel %vm28, %v105, 0
    %109 = vmatprep.subr.mxu0 0.0
    %110 = vmatpush1.xpose.msra.mxu0 %v33
    %111 = vmatprep.subr.mxu0 0.0
    %112 = vmatpush1.xpose.msra.mxu0 0.0
    %113 = vmatprep.subr.mxu0 0.0
    %114 = vmatpush1.xpose.msra.mxu0 0.0
    %115 = vmatprep.subr.mxu0 0.0
    %116 = vmatpush1.xpose.msra.mxu0 0.0
    %117 = vmatprep.subr.mxu0 0.0
    %118 = vmatpush1.xpose.msra.mxu0 0.0
    %119 = vmatprep.subr.mxu0 0.0
    %120 = vmatpush1.xpose.msra.mxu0 0.0
    %121 = vmatprep.subr.mxu0 0.0
    %122 = vmatpush1.xpose.msra.mxu0 0.0
    %123 = vmatprep.subr.mxu0 0.0
    %124 = vmatpush1.xpose.msra.mxu0 0.0
    %125 = vmatprep.subr.mxu0 0.0
    %126 = vmatpush1.xpose.msra.mxu0 0.0
    %127 = vmatprep.subr.mxu0 0.0
    %128 = vmatpush1.xpose.msra.mxu0 0.0
    %129 = vmatprep.subr.mxu0 0.0
    %130 = vmatpush1.xpose.msra.mxu0 0.0
    %131 = vmatprep.subr.mxu0 0.0
    %132 = vmatpush1.xpose.msra.mxu0 0.0
    %133 = vmatprep.subr.mxu0 0.0
    %134 = vmatpush1.xpose.msra.mxu0 0.0
    %135 = vmatprep.subr.mxu0 0.0
    %136 = vmatpush1.xpose.msra.mxu0 0.0
    %137 = vmatprep.subr.mxu0 0.0
    %138 = vmatpush1.xpose.msra.mxu0 0.0
    %139 = vmatprep.subr.mxu0 0.0
    %140 = vmatpush1.xpose.msra.mxu0 0.0
    %141 = vmatprep.subr.mxu0 0.0
    %142 = vmatpush1.xpose.msra.mxu0 0.0
    %143 = vmatprep.subr.mxu0 0.0
    %144 = vmatpush1.xpose.msra.mxu0 0.0
    %145 = vmatprep.subr.mxu0 0.0
    %146 = vmatpush1.xpose.msra.mxu0 0.0
    %147 = vmatprep.subr.mxu0 0.0
    %148 = vmatpush1.xpose.msra.mxu0 0.0
    %149 = vmatprep.subr.mxu0 0.0
    %150 = vmatpush1.xpose.msra.mxu0 0.0
    %151 = vmatprep.subr.mxu0 0.0
    %152 = vmatpush1.xpose.msra.mxu0 0.0
    %153 = vmatprep.subr.mxu0 0.0
    %154 = vmatpush1.xpose.msra.mxu0 0.0
    %155 = vmatprep.subr.mxu0 0.0
    %156 = vmatpush1.xpose.msra.mxu0 0.0
    %157 = vmatprep.subr.mxu0 0.0
    %158 = vmatpush1.xpose.msra.mxu0 0.0
    %159 = vmatprep.subr.mxu0 0.0
    %160 = vmatpush1.xpose.msra.mxu0 0.0
    %161 = vmatprep.subr.mxu0 0.0
    %162 = vmatpush1.xpose.msra.mxu0 0.0
    %163 = vmatprep.subr.mxu0 0.0
    %164 = vmatpush1.xpose.msra.mxu0 0.0
    %165 = vmatprep.subr.mxu0 0.0
    %166 = vmatpush1.xpose.msra.mxu0 0.0
    %167 = vmatprep.subr.mxu0 0.0
    %168 = vmatpush1.xpose.msra.mxu0 0.0
    %169 = vmatprep.subr.mxu0 0.0
    %170 = vmatpush1.xpose.msra.mxu0 0.0
    %171 = vmatprep.subr.mxu0 0.0
    %172 = vmatpush1.xpose.msra.mxu0 0.0
    %173 = vmatprep.mubr.f32.mxu0 0.0
    %174 = vmatmul.mubr.f32.gmra.mrb[0].mxu0 %v107
    %v175 = vpop.f32.mrb[0].mxu0
    %v176 = vadd.f32 0.0, %v175
    %v177 = vpop.f32.mrb[0].mxu0
    %178 = vdwg.mxu0
    %v179 = vmax.f32 %v102, 0.0
    %v180 = vmax.f32 %v176, 0.0
    %v181 = vadd.f32 %v179, %v180
    %vm182 = vcmask 31744
    %v184 = vsel %vm182, %v181, 0
    %v187 = vsel %vm182, %v19, 0
    %v190 = vsel %vm182, %v20, 0
    %v193 = vsel %vm182, %v21, 0
    %v196 = vsel %vm182, %v22, 0
    %v199 = vsel %vm182, %v23, 0
    %v202 = vsel %vm182, %v24, 0
    %v205 = vsel %vm182, %v25, 0
    %v208 = vsel %vm182, %v26, 0
    %210 = vmatprep.subr.mxu0 0.0
    %211 = vmatpush1.xpose.msra.mxu0 %v187
    %212 = vmatprep.subr.mxu0 0.0
    %213 = vmatpush1.xpose.msra.mxu0 %v190
    %214 = vmatprep.subr.mxu0 0.0
    %215 = vmatpush1.xpose.msra.mxu0 %v193
    %216 = vmatprep.subr.mxu0 0.0
    %217 = vmatpush1.xpose.msra.mxu0 %v196
    %218 = vmatprep.subr.mxu0 0.0
    %219 = vmatpush1.xpose.msra.mxu0 %v199
    %220 = vmatprep.subr.mxu0 0.0
    %221 = vmatpush1.xpose.msra.mxu0 %v202
    %222 = vmatprep.subr.mxu0 0.0
    %223 = vmatpush1.xpose.msra.mxu0 %v205
    %224 = vmatprep.subr.mxu0 0.0
    %225 = vmatpush1.xpose.msra.mxu0 %v208
    %226 = vmatprep.subr.mxu0 0.0
    %227 = vmatpush1.xpose.msra.mxu0 0.0
    %228 = vmatprep.subr.mxu0 0.0
    %229 = vmatpush1.xpose.msra.mxu0 0.0
    %230 = vmatprep.subr.mxu0 0.0
    %231 = vmatpush1.xpose.msra.mxu0 0.0
    %232 = vmatprep.subr.mxu0 0.0
    %233 = vmatpush1.xpose.msra.mxu0 0.0
    %234 = vmatprep.subr.mxu0 0.0
    %235 = vmatpush1.xpose.msra.mxu0 0.0
    %236 = vmatprep.subr.mxu0 0.0
    %237 = vmatpush1.xpose.msra.mxu0 0.0
    %238 = vmatprep.subr.mxu0 0.0
    %239 = vmatpush1.xpose.msra.mxu0 0.0
    %240 = vmatprep.subr.mxu0 0.0
    %241 = vmatpush1.xpose.msra.mxu0 0.0
    %242 = vmatprep.subr.mxu0 0.0
    %243 = vmatpush1.xpose.msra.mxu0 0.0
    %244 = vmatprep.subr.mxu0 0.0
    %245 = vmatpush1.xpose.msra.mxu0 0.0
    %246 = vmatprep.subr.mxu0 0.0
    %247 = vmatpush1.xpose.msra.mxu0 0.0
    %248 = vmatprep.subr.mxu0 0.0
    %249 = vmatpush1.xpose.msra.mxu0 0.0
    %250 = vmatprep.subr.mxu0 0.0
    %251 = vmatpush1.xpose.msra.mxu0 0.0
    %252 = vmatprep.subr.mxu0 0.0
    %253 = vmatpush1.xpose.msra.mxu0 0.0
    %254 = vmatprep.subr.mxu0 0.0
    %255 = vmatpush1.xpose.msra.mxu0 0.0
    %256 = vmatprep.subr.mxu0 0.0
    %257 = vmatpush1.xpose.msra.mxu0 0.0
    %258 = vmatprep.subr.mxu0 0.0
    %259 = vmatpush1.xpose.msra.mxu0 0.0
    %260 = vmatprep.subr.mxu0 0.0
    %261 = vmatpush1.xpose.msra.mxu0 0.0
    %262 = vmatprep.subr.mxu0 0.0
    %263 = vmatpush1.xpose.msra.mxu0 0.0
    %264 = vmatprep.subr.mxu0 0.0
    %265 = vmatpush1.xpose.msra.mxu0 0.0
    %266 = vmatprep.subr.mxu0 0.0
    %267 = vmatpush1.xpose.msra.mxu0 0.0
    %268 = vmatprep.subr.mxu0 0.0
    %269 = vmatpush1.xpose.msra.mxu0 0.0
    %270 = vmatprep.subr.mxu0 0.0
    %271 = vmatpush1.xpose.msra.mxu0 0.0
    %272 = vmatprep.subr.mxu0 0.0
    %273 = vmatpush1.xpose.msra.mxu0 0.0
    %274 = vmatprep.mubr.f32.mxu0 0.0
    %275 = vmatmul.mubr.f32.gmra.mrb[0].mxu0 %v184
    %v276 = vpop.f32.mrb[0].mxu0
    %v277 = vadd.f32 0.0, %v276
    %v278 = vpop.f32.mrb[0].mxu0
    %279 = vdwg.mxu0
    %v280 = vxor.u32 %v277, 2147483648
    %v281 = vmul.f32 %v280, 1.442695
    %v282 = vpow.pop %v281
    %v283 = vadd.f32 %v282, 1.0
    %v284 = vrcp.pop %v283
    %v285 = vmul.f32 1.0, %v284
    %vm286 = vcmask 517120
    %287 = vst.msk [vmem:[#allocation2] sm:$0x3] %vm286, %v285
    // Predicated region
    $region18: #{channel_attention_forward.3} parent=1 // pred_check
      _
    $region19: #{channel_attention_forward.3} parent=1 // pred_check_branch
      %289 = sbr.rel (0) target = $region21
    $region20: #{channel_attention_forward.3} parent=1 // pred_region
      %s291 = ssub.s32 32, 32
      %292 = vsyncadd [#allocation3], %s291
      %s294 = sshll.u32 [#allocation2], 4
      %s295 = int_to_ptr.vmem [resolvable:$true] %s294
      %297 = dma.vmem_to_hbm [thread:$0]  %s295, 32, %s4, [#allocation3]
    $region21: #{channel_attention_forward.3} parent=1 // pred_fallthru
      _
    // Predicated region
    $region22: #{channel_attention_forward.3} parent=1 // pred_check
      _
    $region23: #{channel_attention_forward.3} parent=1 // pred_check_branch
      %299 = sbr.rel (0) target = $region25
    $region24: #{channel_attention_forward.3} parent=1 // pred_region
      %300 = dma.done [#allocation3], 32
    $region25: #{channel_attention_forward.3} parent=1 // pred_fallthru
      _
    %301 = vsyncpa [#allocation3], 1

</llo_original>
